<compile_context>
chip_gen: v7x
topology: tpu7x:2x2x1
jax: 0.10.0
libtpu: 0.0.40
codegen_flags: <defaults>
</compile_context>

<pallas_src>
import functools

import jax
import jax.numpy as jnp
from jax.experimental import pallas as pl
from jax.experimental.pallas import tpu as pltpu


_LANE = 128          # lane (last-dim) tile width
_MIB = 1024 * 1024


def _round_up(x, m):
    return (x + m - 1) // m * m


def _sublane(dtype):
    # sublane packing: 8 rows for 32-bit, 16 rows for bf16
    return 16 if jnp.dtype(dtype) == jnp.dtype(jnp.bfloat16) else 8


# ---------------------------------------------------------------------------
# Fused kernel: the entire MLP runs in one pallas_call body.  Intermediate
# activations live in vregs/VMEM only; weights stay VMEM-resident across the
# batch grid (their index_map always returns block (0, 0)).
# ---------------------------------------------------------------------------
def _make_fused_kernel(num_layers):
    def kernel(*refs):
        x_ref = refs[0]
        o_ref = refs[-1]
        h = x_ref[...]                                   # compute dtype (f32/bf16)
        for l in range(num_layers):
            w_ref = refs[1 + 2 * l]
            b_ref = refs[2 + 2 * l]
            # MXU matmul in the weight dtype with f32 accumulation.
            z = jnp.dot(h, w_ref[...], preferred_element_type=jnp.float32)
            z = z + b_ref[...]                           # f32 epilogue (v5e-safe)
            if l < num_layers - 1:
                z = jnp.maximum(z, 0.0)                  # ReLU on hidden blocks
                h = z.astype(w_ref.dtype)                # keep act in compute dtype
            else:
                h = z
        o_ref[...] = h.astype(o_ref.dtype)
    return kernel


@functools.partial(
    jax.jit, static_argnames=("out_dim", "batch_tile", "single_buffer_weights"))
def _fused_forward(x, weights, biases, *, out_dim, batch_tile=512,
                   single_buffer_weights=True):
    B, d_in = x.shape
    compute_dtype = weights[0].dtype
    sub = _sublane(compute_dtype)
    in_pad = weights[0].shape[0]          # sublane-rounded d_in
    out_pad = weights[-1].shape[1]        # 128-rounded output dim
    num_layers = len(weights)

    # ---- batch tiling: large tiles amortize the ~0.35us/step overhead and
    # feed the HBM pipeline; but keep >= 2 steps when B allows so the v7x
    # megacore can split the "parallel" batch axis across both TensorCores.
    n_tiles = max(1, -(-B // batch_tile))
    if n_tiles == 1 and B > 2 * sub:
        n_tiles = 2
    tm = _round_up(-(-B // n_tiles), sub)
    B_pad = _round_up(B, tm)
    # TODO(synk): for production-sized hidden dims also cap tm so
    # tm * max_hidden_dim * itemsize stays a few MiB (avoid vreg/VMEM spills).

    # ---- input: pass in the compute dtype (halves HBM bytes for bf16), pad
    # only if actually needed (skips the wrapper-side XLA pad round-trip).
    x_c = x.astype(compute_dtype)
    pad_b, pad_f = B_pad - B, in_pad - d_in
    if pad_b or pad_f:
        x_c = jnp.pad(x_c, ((0, pad_b), (0, pad_f)))

    # ---- specs.  Weights/biases are grid-invariant -> request single
    # buffering so the resident footprint is 1x, not 2x.
    def _resident_spec(shape):
        if single_buffer_weights:
            return pl.BlockSpec(shape, lambda i: (0, 0),
                                pipeline_mode=pl.Buffered(1))
        return pl.BlockSpec(shape, lambda i: (0, 0))

    # x tile: last dim == full array dim (legal even when not a 128 multiple).
    in_specs = [pl.BlockSpec((tm, in_pad), lambda i: (i, 0))]
    operands = [x_c]
    for w, b in zip(weights, biases):
        in_specs.append(_resident_spec(w.shape))
        in_specs.append(_resident_spec(b.shape))
        operands += [w, b]

    # ---- explicit scoped-VMEM limit: x/out double buffers + resident
    # weights/biases, +25% headroom, clamped to [16 MiB, 64 MiB].
    itemsize = jnp.dtype(compute_dtype).itemsize
    wb_bytes = (sum(int(w.size) * jnp.dtype(w.dtype).itemsize for w in weights)
                + sum(int(b.size) * jnp.dtype(b.dtype).itemsize for b in biases))
    wb_bufs = 1 if single_buffer_weights else 2
    vmem_need = 2 * tm * in_pad * itemsize + 2 * tm * out_pad * 4 + wb_bufs * wb_bytes
    vmem_limit = int(min(max(vmem_need * 1.25, 16 * _MIB), 64 * _MIB))

    flops = 2 * B_pad * sum(w.shape[0] * w.shape[1] for w in weights)
    bytes_accessed = (int(x_c.size) * itemsize + wb_bytes + B_pad * out_pad * 4)

    out = pl.pallas_call(
        _make_fused_kernel(num_layers),
        out_shape=jax.ShapeDtypeStruct((B_pad, out_pad), jnp.float32),
        grid=(B_pad // tm,),
        in_specs=in_specs,
        out_specs=pl.BlockSpec((tm, out_pad), lambda i: (i, 0)),
        compiler_params=pltpu.CompilerParams(
            dimension_semantics=("parallel",),
            vmem_limit_bytes=vmem_limit),
        cost_estimate=pl.CostEstimate(
            flops=flops, transcendentals=0, bytes_accessed=bytes_accessed),
    )(*operands)

    return out[:B, :out_dim]


# ---------------------------------------------------------------------------
# Model: parameters built deterministically in-script; BN folded at init.
# ---------------------------------------------------------------------------
class FullyConnectedPallas:
    """Inference-mode FullyConnected: [Linear+BN(folded)+ReLU+Dropout(id)]* + Linear.

    compute_dtype=bf16 is recommended on all generations (v5e/v6e/v7x MXUs are
    bf16-native; it halves weight + input HBM/VMEM bytes).  The bias/ReLU
    epilogue always runs in f32, so v5e's VPU (no bf16) is fine.  f32 is the
    bit-exact default.
    """

    def __init__(self, dimensions, drop_prob=0.4, key=None,
                 compute_dtype=jnp.float32, batch_tile=512):
        if key is None:
            key = jax.random.PRNGKey(0)
        self.dimensions = list(dimensions)
        self.drop_prob = drop_prob          # Dropout == identity at inference
        self.batch_tile = int(batch_tile)
        self.out_dim = int(dimensions[-1])
        self._single_buffer_weights = True  # try pl.Buffered(1) for resident weights

        num_blocks = len(dimensions) // 2
        eps = 1e-5
        layer_dims = [(dimensions[i], dimensions[i + 1]) for i in range(num_blocks - 1)]
        layer_dims.append((dimensions[-2], dimensions[-1]))    # end_layer

        sub = _sublane(compute_dtype)
        weights, biases = [], []
        for li, (d_in, d_out) in enumerate(layer_dims):
            key, kw, kb = jax.random.split(key, 3)
            bound = 1.0 / (d_in ** 0.5)
            w = jax.random.uniform(kw, (d_in, d_out), jnp.float32, -bound, bound)
            b = jax.random.uniform(kb, (d_out,), jnp.float32, -bound, bound)

            if li < len(layer_dims) - 1:
                # Fold BatchNorm1d (default running stats / affine) into W, b:
                #   (x @ W + b) * scale + shift == x @ (W*scale) + (b*scale + shift)
                gamma = jnp.ones((d_out,), jnp.float32)
                beta = jnp.zeros((d_out,), jnp.float32)
                running_mean = jnp.zeros((d_out,), jnp.float32)
                running_var = jnp.ones((d_out,), jnp.float32)
                scale = gamma / jnp.sqrt(running_var + eps)
                shift = beta - running_mean * scale
                w = w * scale[None, :]
                b = b * scale + shift

            # Layer-0 K dim: sublane-multiple pad only (block last dim == full
            # array dim is legal; avoids 4x wasted layer-0 K work and a wrapper
            # HBM pad).  Hidden/output dims: 128-pad -> lane-dense blocks and
            # unmasked stores.  Zero padding is exact (zero lanes x zero weight
            # rows, zero bias, ReLU(0)=0 chains through).
            d_in_p = _round_up(d_in, sub if li == 0 else _LANE)
            d_out_p = _round_up(d_out, _LANE)
            w_p = jnp.zeros((d_in_p, d_out_p), jnp.float32).at[:d_in, :d_out].set(w)
            b_p = jnp.zeros((1, d_out_p), jnp.float32).at[0, :d_out].set(b)

            weights.append(w_p.astype(compute_dtype))
            biases.append(b_p)                               # f32 epilogue operand

        self.weights = tuple(weights)
        self.biases = tuple(biases)
        # TODO(synk): when total weight bytes approach ~24-32 MiB (v7x has only
        # 64 MiB VMEM/TC), switch to a K-/layer-streamed variant (reduction grid
        # axis marked "arbitrary" + f32 accumulator scratch, or
        # pltpu.emit_pipeline), and consider fp8 weight storage on v7x.

    def __call__(self, x):
        kwargs = dict(out_dim=self.out_dim, batch_tile=self.batch_tile)
        if self._single_buffer_weights:
            try:
                return _fused_forward(x, self.weights, self.biases,
                                      single_buffer_weights=True, **kwargs)
            except Exception:
                # This jax build rejects pl.Buffered(1); fall back to default
                # (double-buffered) resident weights.
                self._single_buffer_weights = False
        return _fused_forward(x, self.weights, self.biases,
                              single_buffer_weights=False, **kwargs)


# ---------------------------------------------------------------------------
# Plain-JAX reference (mirrors the kernel's dtype handling) for sanity checks.
# ---------------------------------------------------------------------------
def reference_forward(model, x):
    in_pad = model.weights[0].shape[0]
    h = x.astype(model.weights[0].dtype)
    if in_pad > x.shape[1]:
        h = jnp.pad(h, ((0, 0), (0, in_pad - x.shape[1])))
    n = len(model.weights)
    for l, (w, b) in enumerate(zip(model.weights, model.biases)):
        z = jnp.dot(h, w, preferred_element_type=jnp.float32) + b
        if l < n - 1:
            z = jnp.maximum(z, 0.0)
            h = z.astype(w.dtype)
        else:
            h = z
    return h[:, : model.out_dim]


if __name__ == "__main__":
    # dimensions chosen so the hidden chain output matches end_layer's input
    # (dimensions[num_blocks-1] == dimensions[-2]), as the module requires.
    dimensions = [32, 64, 64, 16]   # Linear(32,64)+BN+ReLU+Dropout, end Linear(64,16)
    batch = 8

    x = jax.random.normal(jax.random.PRNGKey(0), (batch, dimensions[0]), jnp.float32)

    # f32 path (bit-exact weights; exact vs reference modulo MXU accumulation).
    model_f32 = FullyConnectedPallas(dimensions, drop_prob=0.4,
                                     key=jax.random.PRNGKey(1),
                                     compute_dtype=jnp.float32)
    out_f32 = jax.block_until_ready(model_f32(x))
    ref_f32 = reference_forward(model_f32, x)
    assert out_f32.shape == (batch, dimensions[-1]), out_f32.shape
    assert jnp.allclose(out_f32, ref_f32, atol=1e-3, rtol=1e-3), "f32 mismatch vs reference"

    # bf16 weights/activations + f32 accumulation/epilogue (recommended on all
    # chips: halves weight + input bytes, matches the bf16-native MXU).
    model_bf16 = FullyConnectedPallas(dimensions, drop_prob=0.4,
                                      key=jax.random.PRNGKey(1),
                                      compute_dtype=jnp.bfloat16)
    out_bf16 = jax.block_until_ready(model_bf16(x))
    ref_bf16 = reference_forward(model_bf16, x)
    assert out_bf16.shape == (batch, dimensions[-1]), out_bf16.shape
    assert jnp.allclose(out_bf16, ref_bf16, atol=5e-2, rtol=5e-2), "bf16 mismatch vs reference"

    print("KERNEL_OK")
</pallas_src>

<mosaic_0001>
module attributes {stable_mosaic.version = 11 : i64} {
  func.func @kernel(%arg0: i32, %arg1: memref<8x32xf32, #tpu.memory_space<vmem>>, %arg2: memref<32x128xf32, #tpu.memory_space<vmem>>, %arg3: memref<1x128xf32, #tpu.memory_space<vmem>>, %arg4: memref<128x128xf32, #tpu.memory_space<vmem>>, %arg5: memref<1x128xf32, #tpu.memory_space<vmem>>, %arg6: memref<8x128xf32, #tpu.memory_space<vmem>>) attributes {dimension_semantics = [#tpu.dimension_semantics<parallel>], iteration_bounds = array<i64: 1>, scalar_prefetch = 0 : i64, scratch_operands = 0 : i64, tpu.core_type = #tpu.core_type<tc>, window_params = [{transform_indices = @transform_0, window_bounds = array<i64: 8, 32>}, {pipeline_mode = #tpu.pipeline_mode<synchronous>, transform_indices = @transform_1, window_bounds = array<i64: 32, 128>}, {pipeline_mode = #tpu.pipeline_mode<synchronous>, transform_indices = @transform_2, window_bounds = array<i64: 1, 128>}, {pipeline_mode = #tpu.pipeline_mode<synchronous>, transform_indices = @transform_3, window_bounds = array<i64: 128, 128>}, {pipeline_mode = #tpu.pipeline_mode<synchronous>, transform_indices = @transform_4, window_bounds = array<i64: 1, 128>}, {transform_indices = @transform_5, window_bounds = array<i64: 8, 128>}]} {
    %c0 = arith.constant 0 : index
    %c0_0 = arith.constant 0 : index
    %0 = vector.load %arg1[%c0, %c0_0] : memref<8x32xf32, #tpu.memory_space<vmem>>, vector<8x32xf32>
    %c0_1 = arith.constant 0 : index
    %c0_2 = arith.constant 0 : index
    %1 = vector.load %arg2[%c0_1, %c0_2] : memref<32x128xf32, #tpu.memory_space<vmem>>, vector<32x128xf32>
    %cst = arith.constant dense<0.000000e+00> : vector<8x128xf32>
    %2 = tpu.matmul %0, %1, %cst {dimension_numbers = #tpu.dot_dimension_numbers<[1], [0], [0], [1], [0, 0, 1, 1], [], []>} : vector<8x32xf32>, vector<32x128xf32>, vector<8x128xf32> -> vector<8x128xf32>
    %c0_3 = arith.constant 0 : index
    %c0_4 = arith.constant 0 : index
    %3 = vector.load %arg3[%c0_3, %c0_4] : memref<1x128xf32, #tpu.memory_space<vmem>>, vector<1x128xf32>
    %4 = vector.broadcast %3 : vector<1x128xf32> to vector<8x128xf32>
    %5 = arith.addf %2, %4 : vector<8x128xf32>
    %cst_5 = arith.constant 0.000000e+00 : f32
    %6 = vector.broadcast %cst_5 : f32 to vector<8x128xf32>
    %7 = arith.maximumf %5, %6 : vector<8x128xf32>
    %c0_6 = arith.constant 0 : index
    %c0_7 = arith.constant 0 : index
    %8 = vector.load %arg4[%c0_6, %c0_7] : memref<128x128xf32, #tpu.memory_space<vmem>>, vector<128x128xf32>
    %cst_8 = arith.constant dense<0.000000e+00> : vector<8x128xf32>
    %9 = tpu.matmul %7, %8, %cst_8 {dimension_numbers = #tpu.dot_dimension_numbers<[1], [0], [0], [1], [0, 0, 1, 1], [], []>} : vector<8x128xf32>, vector<128x128xf32>, vector<8x128xf32> -> vector<8x128xf32>
    %c0_9 = arith.constant 0 : index
    %c0_10 = arith.constant 0 : index
    %10 = vector.load %arg5[%c0_9, %c0_10] : memref<1x128xf32, #tpu.memory_space<vmem>>, vector<1x128xf32>
    %11 = vector.broadcast %10 : vector<1x128xf32> to vector<8x128xf32>
    %12 = arith.addf %9, %11 : vector<8x128xf32>
    %c0_11 = arith.constant 0 : index
    %c0_12 = arith.constant 0 : index
    %13 = vector.load %arg6[%c0_11, %c0_12] : memref<8x128xf32, #tpu.memory_space<vmem>>, vector<8x128xf32>
    tpu.vector_store %arg6[%c0_11, %c0_12], %12 {strides = array<i32>} : memref<8x128xf32, #tpu.memory_space<vmem>>, vector<8x128xf32>,
    return
  }
  func.func @transform_0(%arg0: i32) -> (i32, i32) {
    %c0_i32 = arith.constant 0 : i32
    %c0_i32_0 = arith.constant 0 : i32
    return %arg0, %c0_i32 : i32, i32
  }
  func.func @transform_1(%arg0: i32) -> (i32, i32) {
    %c0_i32 = arith.constant 0 : i32
    %c0_i32_0 = arith.constant 0 : i32
    %c0_i32_1 = arith.constant 0 : i32
    return %c0_i32, %c0_i32_0 : i32, i32
  }
  func.func @transform_2(%arg0: i32) -> (i32, i32) {
    %c0_i32 = arith.constant 0 : i32
    %c0_i32_0 = arith.constant 0 : i32
    %c0_i32_1 = arith.constant 0 : i32
    return %c0_i32, %c0_i32_0 : i32, i32
  }
  func.func @transform_3(%arg0: i32) -> (i32, i32) {
    %c0_i32 = arith.constant 0 : i32
    %c0_i32_0 = arith.constant 0 : i32
    %c0_i32_1 = arith.constant 0 : i32
    return %c0_i32, %c0_i32_0 : i32, i32
  }
  func.func @transform_4(%arg0: i32) -> (i32, i32) {
    %c0_i32 = arith.constant 0 : i32
    %c0_i32_0 = arith.constant 0 : i32
    %c0_i32_1 = arith.constant 0 : i32
    return %c0_i32, %c0_i32_0 : i32, i32
  }
  func.func @transform_5(%arg0: i32) -> (i32, i32) {
    %c0_i32 = arith.constant 0 : i32
    %c0_i32_0 = arith.constant 0 : i32
    return %arg0, %c0_i32 : i32, i32
  }
}

module attributes {stable_mosaic.version = 11 : i64} {
  func.func @kernel(%arg0: i32, %arg1: memref<8x32xf32, #tpu.memory_space<vmem>>, %arg2: memref<32x128xf32, #tpu.memory_space<vmem>>, %arg3: memref<1x128xf32, #tpu.memory_space<vmem>>, %arg4: memref<128x128xf32, #tpu.memory_space<vmem>>, %arg5: memref<1x128xf32, #tpu.memory_space<vmem>>, %arg6: memref<8x128xf32, #tpu.memory_space<vmem>>) attributes {dimension_semantics = [#tpu.dimension_semantics<parallel>], iteration_bounds = array<i64: 1>, scalar_prefetch = 0 : i64, scratch_operands = 0 : i64, tpu.core_type = #tpu.core_type<tc>, window_params = [{transform_indices = @transform_0, window_bounds = array<i64: 8, 32>}, {pipeline_mode = #tpu.pipeline_mode<synchronous>, transform_indices = @transform_1, window_bounds = array<i64: 32, 128>}, {pipeline_mode = #tpu.pipeline_mode<synchronous>, transform_indices = @transform_2, window_bounds = array<i64: 1, 128>}, {pipeline_mode = #tpu.pipeline_mode<synchronous>, transform_indices = @transform_3, window_bounds = array<i64: 128, 128>}, {pipeline_mode = #tpu.pipeline_mode<synchronous>, transform_indices = @transform_4, window_bounds = array<i64: 1, 128>}, {transform_indices = @transform_5, window_bounds = array<i64: 8, 128>}]} {
    %c0 = arith.constant 0 : index
    %c0_0 = arith.constant 0 : index
    %0 = vector.load %arg1[%c0, %c0_0] : memref<8x32xf32, #tpu.memory_space<vmem>>, vector<8x32xf32>
    %c0_1 = arith.constant 0 : index
    %c0_2 = arith.constant 0 : index
    %1 = vector.load %arg2[%c0_1, %c0_2] : memref<32x128xf32, #tpu.memory_space<vmem>>, vector<32x128xf32>
    %cst = arith.constant dense<0.000000e+00> : vector<8x128xf32>
    %2 = tpu.matmul %0, %1, %cst {dimension_numbers = #tpu.dot_dimension_numbers<[1], [0], [0], [1], [0, 0, 1, 1], [], []>} : vector<8x32xf32>, vector<32x128xf32>, vector<8x128xf32> -> vector<8x128xf32>
    %c0_3 = arith.constant 0 : index
    %c0_4 = arith.constant 0 : index
    %3 = vector.load %arg3[%c0_3, %c0_4] : memref<1x128xf32, #tpu.memory_space<vmem>>, vector<1x128xf32>
    %4 = vector.broadcast %3 : vector<1x128xf32> to vector<8x128xf32>
    %5 = arith.addf %2, %4 : vector<8x128xf32>
    %cst_5 = arith.constant 0.000000e+00 : f32
    %6 = vector.broadcast %cst_5 : f32 to vector<8x128xf32>
    %7 = arith.maximumf %5, %6 : vector<8x128xf32>
    %c0_6 = arith.constant 0 : index
    %c0_7 = arith.constant 0 : index
    %8 = vector.load %arg4[%c0_6, %c0_7] : memref<128x128xf32, #tpu.memory_space<vmem>>, vector<128x128xf32>
    %cst_8 = arith.constant dense<0.000000e+00> : vector<8x128xf32>
    %9 = tpu.matmul %7, %8, %cst_8 {dimension_numbers = #tpu.dot_dimension_numbers<[1], [0], [0], [1], [0, 0, 1, 1], [], []>} : vector<8x128xf32>, vector<128x128xf32>, vector<8x128xf32> -> vector<8x128xf32>
    %c0_9 = arith.constant 0 : index
    %c0_10 = arith.constant 0 : index
    %10 = vector.load %arg5[%c0_9, %c0_10] : memref<1x128xf32, #tpu.memory_space<vmem>>, vector<1x128xf32>
    %11 = vector.broadcast %10 : vector<1x128xf32> to vector<8x128xf32>
    %12 = arith.addf %9, %11 : vector<8x128xf32>
    %c0_11 = arith.constant 0 : index
    %c0_12 = arith.constant 0 : index
    %13 = vector.load %arg6[%c0_11, %c0_12] : memref<8x128xf32, #tpu.memory_space<vmem>>, vector<8x128xf32>
    tpu.vector_store %arg6[%c0_11, %c0_12], %12 {strides = array<i32>} : memref<8x128xf32, #tpu.memory_space<vmem>>, vector<8x128xf32>,
    return
  }
  func.func @transform_0(%arg0: i32) -> (i32, i32) {
    %c0_i32 = arith.constant 0 : i32
    %c0_i32_0 = arith.constant 0 : i32
    return %arg0, %c0_i32 : i32, i32
  }
  func.func @transform_1(%arg0: i32) -> (i32, i32) {
    %c0_i32 = arith.constant 0 : i32
    %c0_i32_0 = arith.constant 0 : i32
    %c0_i32_1 = arith.constant 0 : i32
    return %c0_i32, %c0_i32_0 : i32, i32
  }
  func.func @transform_2(%arg0: i32) -> (i32, i32) {
    %c0_i32 = arith.constant 0 : i32
    %c0_i32_0 = arith.constant 0 : i32
    %c0_i32_1 = arith.constant 0 : i32
    return %c0_i32, %c0_i32_0 : i32, i32
  }
  func.func @transform_3(%arg0: i32) -> (i32, i32) {
    %c0_i32 = arith.constant 0 : i32
    %c0_i32_0 = arith.constant 0 : i32
    %c0_i32_1 = arith.constant 0 : i32
    return %c0_i32, %c0_i32_0 : i32, i32
  }
  func.func @transform_4(%arg0: i32) -> (i32, i32) {
    %c0_i32 = arith.constant 0 : i32
    %c0_i32_0 = arith.constant 0 : i32
    %c0_i32_1 = arith.constant 0 : i32
    return %c0_i32, %c0_i32_0 : i32, i32
  }
  func.func @transform_5(%arg0: i32) -> (i32, i32) {
    %c0_i32 = arith.constant 0 : i32
    %c0_i32_0 = arith.constant 0 : i32
    return %arg0, %c0_i32 : i32, i32
  }
}

</mosaic_0001>

<llo_original>
// kernel: _fused_forward.1
$region0: #{_fused_forward.1}
  #allocation0 [shape = 'u32[]', space=smem, size = 0x4, offset = 0x4, fixed_abs, tag = 'smem constant byte address 0x4 - core index']
  #allocation1 [shape = 'u32[144,128]{1,0:T(1,128)}', space=vmem, size = 0x12000, scoped, tag = 'internal scratch']
  %s0 = inlined_call_operand.hbm [shape: f32[8,32], index: 0, kind: input, shape index: {}]
  %s1 = inlined_call_operand.hbm [shape: f32[32,128], index: 1, kind: input, shape index: {}]
  %s2 = inlined_call_operand.vmem [shape: f32[1,128], index: 2, kind: input, shape index: {}]
  %s3 = inlined_call_operand.hbm [shape: f32[128,128], index: 3, kind: input, shape index: {}]
  %s4 = inlined_call_operand.vmem [shape: f32[1,128], index: 4, kind: input, shape index: {}]
  %s5 = inlined_call_operand.hbm [shape: f32[8,128], index: 5, kind: output, shape index: {}]
  %s6 = sld [smem:[#allocation0]]
  $region42: #{_fused_forward.1} parent=0
    _
  %s8 = ssub.s32 1, %s6
  %s9 = scalar_select 0, %s8, %s6
  $region1: #{_fused_forward.1} parent=0
    #allocation2 [shape = 'u8[4096]{0}', space=vmem, size = 0x1000, scoped, tag = 'input window, operand 0, single buffered']
    #allocation3 [shape = 's32[1]{0}', space=sflag, size = 0x4, scoped, tag = 'scoped memory for _fused_forward.1']
    #allocation4 [shape = 's32[1]{0}', space=sflag, size = 0x4, scoped, tag = 'scoped memory for _fused_forward.1']
    #allocation5 [shape = 'u8[16384]{0}', space=vmem, size = 0x4000, scoped, tag = 'input window, operand 1, single buffered']
    #allocation6 [shape = 's32[1]{0}', space=sflag, size = 0x4, scoped, tag = 'scoped memory for _fused_forward.1']
    #allocation7 [shape = 'u8[65536]{0}', space=vmem, size = 0x10000, scoped, tag = 'input window, operand 3, single buffered']
    #allocation8 [shape = 'u8[4096]{0}', space=vmem, size = 0x1000, scoped, tag = 'output window, operand 0, single buffered']
    %10 = vsyncpa [#allocation3], 0
    %11 = vsyncpa [#allocation6], 0
    %12 = vsyncpa [#allocation4], 0
    // Predicated region
    $region2: #{_fused_forward.1} parent=1 // pred_check
      _
    $region3: #{_fused_forward.1} parent=1 // pred_check_branch
      %14 = sbr.rel (0) target = $region5
    $region4: #{_fused_forward.1} parent=1 // pred_region
      %s16 = ssub.s32 128, 128
      %17 = vsyncadd [#allocation3], %s16
      %s19 = sshll.u32 [#allocation2], 4
      %s20 = int_to_ptr.vmem [resolvable:$true] %s19
      %22 = dma.hbm_to_vmem [thread:$0]  %s0, 128, %s20, [#allocation3]
    $region5: #{_fused_forward.1} parent=1 // pred_fallthru
      _
    // Predicated region
    $region6: #{_fused_forward.1} parent=1 // pred_check
      _
    $region7: #{_fused_forward.1} parent=1 // pred_check_branch
      %24 = sbr.rel (0) target = $region9
    $region8: #{_fused_forward.1} parent=1 // pred_region
      %s26 = ssub.s32 512, 512
      %27 = vsyncadd [#allocation6], %s26
      %s28 = sshll.u32 [#allocation5], 4
      %s29 = int_to_ptr.vmem [resolvable:$true] %s28
      %34 = dma.hbm_to_vmem [thread:$0]  %s1, 512, %s29, [#allocation6], 128, 128, 8
    $region9: #{_fused_forward.1} parent=1 // pred_fallthru
      _
    // Predicated region
    $region10: #{_fused_forward.1} parent=1 // pred_check
      _
    $region11: #{_fused_forward.1} parent=1 // pred_check_branch
      %36 = sbr.rel (0) target = $region13
    $region12: #{_fused_forward.1} parent=1 // pred_region
      _
    $region13: #{_fused_forward.1} parent=1 // pred_fallthru
      _
    // Predicated region
    $region14: #{_fused_forward.1} parent=1 // pred_check
      _
    $region15: #{_fused_forward.1} parent=1 // pred_check_branch
      %38 = sbr.rel (0) target = $region17
    $region16: #{_fused_forward.1} parent=1 // pred_region
      %s40 = ssub.s32 2048, 2048
      %41 = vsyncadd [#allocation6], %s40
      %s42 = sshll.u32 [#allocation7], 4
      %s43 = int_to_ptr.vmem [resolvable:$true] %s42
      %48 = dma.hbm_to_vmem [thread:$0]  %s3, 2048, %s43, [#allocation6], 128, 128, 8
    $region17: #{_fused_forward.1} parent=1 // pred_fallthru
      _
    // Predicated region
    $region18: #{_fused_forward.1} parent=1 // pred_check
      _
    $region19: #{_fused_forward.1} parent=1 // pred_check_branch
      %50 = sbr.rel (0) target = $region21
    $region20: #{_fused_forward.1} parent=1 // pred_region
      _
    $region21: #{_fused_forward.1} parent=1 // pred_fallthru
      _
    // Predicated region
    $region22: #{_fused_forward.1} parent=1 // pred_check
      _
    $region23: #{_fused_forward.1} parent=1 // pred_check_branch
      %52 = sbr.rel (0) target = $region25
    $region24: #{_fused_forward.1} parent=1 // pred_region
      %53 = dma.done [#allocation3], 128
    $region25: #{_fused_forward.1} parent=1 // pred_fallthru
      _
    // Predicated region
    $region26: #{_fused_forward.1} parent=1 // pred_check
      _
    $region27: #{_fused_forward.1} parent=1 // pred_check_branch
      %55 = sbr.rel (0) target = $region29
    $region28: #{_fused_forward.1} parent=1 // pred_region
      %56 = dma.done [#allocation6], 512
    $region29: #{_fused_forward.1} parent=1 // pred_fallthru
      _
    // Predicated region
    $region30: #{_fused_forward.1} parent=1 // pred_check
      _
    $region31: #{_fused_forward.1} parent=1 // pred_check_branch
      %58 = sbr.rel (0) target = $region33
    $region32: #{_fused_forward.1} parent=1 // pred_region
      %59 = dma.done [#allocation6], 2048
    $region33: #{_fused_forward.1} parent=1 // pred_fallthru
      _
    %v60 = vld [vmem:[#allocation2] sm:$0xff]
    %v61 = vld [vmem:[#allocation5] sm:$0xff]
    %v62 = vld [vmem:[#allocation5 + $0x8] sm:$0xff]
    %v63 = vld [vmem:[#allocation5 + $0x10] sm:$0xff]
    %v64 = vld [vmem:[#allocation5 + $0x18] sm:$0xff]
    %v65 = vld [vmem:[%s2] sm:$0x1]
    %v67 = vlaneseq
    %v68 = vshrl.u32 %v67, 7
    %v69 = vsub.s32 0, %v68
    %v70 = vrot.slane %v65, %v69
    %vm72 = vcmask 261120
    %v74 = vsel %vm72, %v60, 0
    %76 = vmatprep.subr.mxu0 0.0
    %77 = vmatpush1.msra.mxu0 %v61
    %78 = vmatprep.subr.mxu0 0.0
    %79 = vmatpush1.msra.mxu0 %v62
    %80 = vmatprep.subr.mxu0 0.0
    %81 = vmatpush1.msra.mxu0 %v63
    %82 = vmatprep.subr.mxu0 0.0
    %83 = vmatpush1.msra.mxu0 %v64
    %84 = vmatprep.subr.mxu0 0.0
    %85 = vmatpush1.msra.mxu0 0.0
    %86 = vmatprep.subr.mxu0 0.0
    %87 = vmatpush1.msra.mxu0 0.0
    %88 = vmatprep.subr.mxu0 0.0
    %89 = vmatpush1.msra.mxu0 0.0
    %90 = vmatprep.subr.mxu0 0.0
    %91 = vmatpush1.msra.mxu0 0.0
    %92 = vmatprep.subr.mxu0 0.0
    %93 = vmatpush1.msra.mxu0 0.0
    %94 = vmatprep.subr.mxu0 0.0
    %95 = vmatpush1.msra.mxu0 0.0
    %96 = vmatprep.subr.mxu0 0.0
    %97 = vmatpush1.msra.mxu0 0.0
    %98 = vmatprep.subr.mxu0 0.0
    %99 = vmatpush1.msra.mxu0 0.0
    %100 = vmatprep.subr.mxu0 0.0
    %101 = vmatpush1.msra.mxu0 0.0
    %102 = vmatprep.subr.mxu0 0.0
    %103 = vmatpush1.msra.mxu0 0.0
    %104 = vmatprep.subr.mxu0 0.0
    %105 = vmatpush1.msra.mxu0 0.0
    %106 = vmatprep.subr.mxu0 0.0
    %107 = vmatpush1.msra.mxu0 0.0
    %108 = vmatprep.subr.mxu0 0.0
    %109 = vmatpush1.msra.mxu0 0.0
    %110 = vmatprep.subr.mxu0 0.0
    %111 = vmatpush1.msra.mxu0 0.0
    %112 = vmatprep.subr.mxu0 0.0
    %113 = vmatpush1.msra.mxu0 0.0
    %114 = vmatprep.subr.mxu0 0.0
    %115 = vmatpush1.msra.mxu0 0.0
    %116 = vmatprep.subr.mxu0 0.0
    %117 = vmatpush1.msra.mxu0 0.0
    %118 = vmatprep.subr.mxu0 0.0
    %119 = vmatpush1.msra.mxu0 0.0
    %120 = vmatprep.subr.mxu0 0.0
    %121 = vmatpush1.msra.mxu0 0.0
    %122 = vmatprep.subr.mxu0 0.0
    %123 = vmatpush1.msra.mxu0 0.0
    %124 = vmatprep.subr.mxu0 0.0
    %125 = vmatpush1.msra.mxu0 0.0
    %126 = vmatprep.subr.mxu0 0.0
    %127 = vmatpush1.msra.mxu0 0.0
    %128 = vmatprep.subr.mxu0 0.0
    %129 = vmatpush1.msra.mxu0 0.0
    %130 = vmatprep.subr.mxu0 0.0
    %131 = vmatpush1.msra.mxu0 0.0
    %132 = vmatprep.subr.mxu0 0.0
    %133 = vmatpush1.msra.mxu0 0.0
    %134 = vmatprep.subr.mxu0 0.0
    %135 = vmatpush1.msra.mxu0 0.0
    %136 = vmatprep.subr.mxu0 0.0
    %137 = vmatpush1.msra.mxu0 0.0
    %138 = vmatprep.subr.mxu0 0.0
    %139 = vmatpush1.msra.mxu0 0.0
    %140 = vmatprep.mubr.f32.mxu0 0.0
    %141 = vmatmul.mubr.f32.gmra.mrb[0].mxu0 %v74
    %v142 = vpop.f32.mrb[0].mxu0
    %v143 = vadd.f32 %v70, %v142
    %v144 = vpop.f32.mrb[0].mxu0
    %145 = vdwg.mxu0
    %v146 = vmax.f32 %v143, 0.0
    %v147 = vld [vmem:[#allocation7] sm:$0xff]
    %v148 = vld [vmem:[#allocation7 + $0x8] sm:$0xff]
    %v149 = vld [vmem:[#allocation7 + $0x10] sm:$0xff]
    %v150 = vld [vmem:[#allocation7 + $0x18] sm:$0xff]
    %v151 = vld [vmem:[#allocation7 + $0x20] sm:$0xff]
    %v152 = vld [vmem:[#allocation7 + $0x28] sm:$0xff]
    %v153 = vld [vmem:[#allocation7 + $0x30] sm:$0xff]
    %v154 = vld [vmem:[#allocation7 + $0x38] sm:$0xff]
    %v155 = vld [vmem:[#allocation7 + $0x40] sm:$0xff]
    %v156 = vld [vmem:[#allocation7 + $0x48] sm:$0xff]
    %v157 = vld [vmem:[#allocation7 + $0x50] sm:$0xff]
    %v158 = vld [vmem:[#allocation7 + $0x58] sm:$0xff]
    %v159 = vld [vmem:[#allocation7 + $0x60] sm:$0xff]
    %v160 = vld [vmem:[#allocation7 + $0x68] sm:$0xff]
    %v161 = vld [vmem:[#allocation7 + $0x70] sm:$0xff]
    %v162 = vld [vmem:[#allocation7 + $0x78] sm:$0xff]
    %v163 = vld [vmem:[%s4] sm:$0x1]
    %v165 = vlaneseq
    %v166 = vshrl.u32 %v165, 7
    %v167 = vsub.s32 0, %v166
    %v168 = vrot.slane %v163, %v167
    %170 = vmatprep.subr.mxu0 0.0
    %171 = vmatpush1.msra.mxu0 %v147
    %172 = vmatprep.subr.mxu0 0.0
    %173 = vmatpush1.msra.mxu0 %v148
    %174 = vmatprep.subr.mxu0 0.0
    %175 = vmatpush1.msra.mxu0 %v149
    %176 = vmatprep.subr.mxu0 0.0
    %177 = vmatpush1.msra.mxu0 %v150
    %178 = vmatprep.subr.mxu0 0.0
    %179 = vmatpush1.msra.mxu0 %v151
    %180 = vmatprep.subr.mxu0 0.0
    %181 = vmatpush1.msra.mxu0 %v152
    %182 = vmatprep.subr.mxu0 0.0
    %183 = vmatpush1.msra.mxu0 %v153
    %184 = vmatprep.subr.mxu0 0.0
    %185 = vmatpush1.msra.mxu0 %v154
    %186 = vmatprep.subr.mxu0 0.0
    %187 = vmatpush1.msra.mxu0 %v155
    %188 = vmatprep.subr.mxu0 0.0
    %189 = vmatpush1.msra.mxu0 %v156
    %190 = vmatprep.subr.mxu0 0.0
    %191 = vmatpush1.msra.mxu0 %v157
    %192 = vmatprep.subr.mxu0 0.0
    %193 = vmatpush1.msra.mxu0 %v158
    %194 = vmatprep.subr.mxu0 0.0
    %195 = vmatpush1.msra.mxu0 %v159
    %196 = vmatprep.subr.mxu0 0.0
    %197 = vmatpush1.msra.mxu0 %v160
    %198 = vmatprep.subr.mxu0 0.0
    %199 = vmatpush1.msra.mxu0 %v161
    %200 = vmatprep.subr.mxu0 0.0
    %201 = vmatpush1.msra.mxu0 %v162
    %202 = vmatprep.subr.mxu0 0.0
    %203 = vmatpush1.msra.mxu0 0.0
    %204 = vmatprep.subr.mxu0 0.0
    %205 = vmatpush1.msra.mxu0 0.0
    %206 = vmatprep.subr.mxu0 0.0
    %207 = vmatpush1.msra.mxu0 0.0
    %208 = vmatprep.subr.mxu0 0.0
    %209 = vmatpush1.msra.mxu0 0.0
    %210 = vmatprep.subr.mxu0 0.0
    %211 = vmatpush1.msra.mxu0 0.0
    %212 = vmatprep.subr.mxu0 0.0
    %213 = vmatpush1.msra.mxu0 0.0
    %214 = vmatprep.subr.mxu0 0.0
    %215 = vmatpush1.msra.mxu0 0.0
    %216 = vmatprep.subr.mxu0 0.0
    %217 = vmatpush1.msra.mxu0 0.0
    %218 = vmatprep.subr.mxu0 0.0
    %219 = vmatpush1.msra.mxu0 0.0
    %220 = vmatprep.subr.mxu0 0.0
    %221 = vmatpush1.msra.mxu0 0.0
    %222 = vmatprep.subr.mxu0 0.0
    %223 = vmatpush1.msra.mxu0 0.0
    %224 = vmatprep.subr.mxu0 0.0
    %225 = vmatpush1.msra.mxu0 0.0
    %226 = vmatprep.subr.mxu0 0.0
    %227 = vmatpush1.msra.mxu0 0.0
    %228 = vmatprep.subr.mxu0 0.0
    %229 = vmatpush1.msra.mxu0 0.0
    %230 = vmatprep.subr.mxu0 0.0
    %231 = vmatpush1.msra.mxu0 0.0
    %232 = vmatprep.subr.mxu0 0.0
    %233 = vmatpush1.msra.mxu0 0.0
    %234 = vmatprep.mubr.f32.mxu0 0.0
    %235 = vmatmul.mubr.f32.gmra.mrb[0].mxu0 %v146
    %v236 = vpop.f32.mrb[0].mxu0
    %v237 = vadd.f32 %v168, %v236
    %v238 = vpop.f32.mrb[0].mxu0
    %239 = vdwg.mxu0
    %240 = vst [vmem:[#allocation8] sm:$0xff] %v237
    // Predicated region
    $region34: #{_fused_forward.1} parent=1 // pred_check
      _
    $region35: #{_fused_forward.1} parent=1 // pred_check_branch
      %242 = sbr.rel (0) target = $region37
    $region36: #{_fused_forward.1} parent=1 // pred_region
      %s244 = ssub.s32 128, 128
      %245 = vsyncadd [#allocation4], %s244
      %s247 = sshll.u32 [#allocation8], 4
      %s248 = int_to_ptr.vmem [resolvable:$true] %s247
      %250 = dma.vmem_to_hbm [thread:$0]  %s248, 128, %s5, [#allocation4]
    $region37: #{_fused_forward.1} parent=1 // pred_fallthru
      _
    // Predicated region
    $region38: #{_fused_forward.1} parent=1 // pred_check
      _
    $region39: #{_fused_forward.1} parent=1 // pred_check_branch
      %252 = sbr.rel (0) target = $region41
    $region40: #{_fused_forward.1} parent=1 // pred_region
      %253 = dma.done [#allocation4], 128
    $region41: #{_fused_forward.1} parent=1 // pred_fallthru
      _
    %254 = vsyncpa [#allocation3], 1
    %255 = vsyncpa [#allocation6], 1
    %256 = vsyncpa [#allocation4], 1

// kernel: _fused_forward.1
$region0: #{_fused_forward.1}
  #allocation0 [shape = 'u32[]', space=smem, size = 0x4, offset = 0x4, fixed_abs, tag = 'smem constant byte address 0x4 - core index']
  #allocation1 [shape = 'u32[144,128]{1,0:T(1,128)}', space=vmem, size = 0x12000, scoped, tag = 'internal scratch']
  %s0 = inlined_call_operand.hbm [shape: f32[8,32], index: 0, kind: input, shape index: {}]
  %s1 = inlined_call_operand.hbm [shape: f32[32,128], index: 1, kind: input, shape index: {}]
  %s2 = inlined_call_operand.vmem [shape: f32[1,128], index: 2, kind: input, shape index: {}]
  %s3 = inlined_call_operand.hbm [shape: f32[128,128], index: 3, kind: input, shape index: {}]
  %s4 = inlined_call_operand.vmem [shape: f32[1,128], index: 4, kind: input, shape index: {}]
  %s5 = inlined_call_operand.hbm [shape: f32[8,128], index: 5, kind: output, shape index: {}]
  %s6 = sld [smem:[#allocation0]]
  $region42: #{_fused_forward.1} parent=0
    _
  %s8 = ssub.s32 1, %s6
  %s9 = scalar_select 0, %s8, %s6
  $region1: #{_fused_forward.1} parent=0
    #allocation2 [shape = 'u8[4096]{0}', space=vmem, size = 0x1000, scoped, tag = 'input window, operand 0, single buffered']
    #allocation3 [shape = 's32[1]{0}', space=sflag, size = 0x4, scoped, tag = 'scoped memory for _fused_forward.1']
    #allocation4 [shape = 's32[1]{0}', space=sflag, size = 0x4, scoped, tag = 'scoped memory for _fused_forward.1']
    #allocation5 [shape = 'u8[16384]{0}', space=vmem, size = 0x4000, scoped, tag = 'input window, operand 1, single buffered']
    #allocation6 [shape = 's32[1]{0}', space=sflag, size = 0x4, scoped, tag = 'scoped memory for _fused_forward.1']
    #allocation7 [shape = 'u8[65536]{0}', space=vmem, size = 0x10000, scoped, tag = 'input window, operand 3, single buffered']
    #allocation8 [shape = 'u8[4096]{0}', space=vmem, size = 0x1000, scoped, tag = 'output window, operand 0, single buffered']
    %10 = vsyncpa [#allocation3], 0
    %11 = vsyncpa [#allocation6], 0
    %12 = vsyncpa [#allocation4], 0
    // Predicated region
    $region2: #{_fused_forward.1} parent=1 // pred_check
      _
    $region3: #{_fused_forward.1} parent=1 // pred_check_branch
      %14 = sbr.rel (0) target = $region5
    $region4: #{_fused_forward.1} parent=1 // pred_region
      %s16 = ssub.s32 128, 128
      %17 = vsyncadd [#allocation3], %s16
      %s19 = sshll.u32 [#allocation2], 4
      %s20 = int_to_ptr.vmem [resolvable:$true] %s19
      %22 = dma.hbm_to_vmem [thread:$0]  %s0, 128, %s20, [#allocation3]
    $region5: #{_fused_forward.1} parent=1 // pred_fallthru
      _
    // Predicated region
    $region6: #{_fused_forward.1} parent=1 // pred_check
      _
    $region7: #{_fused_forward.1} parent=1 // pred_check_branch
      %24 = sbr.rel (0) target = $region9
    $region8: #{_fused_forward.1} parent=1 // pred_region
      %s26 = ssub.s32 512, 512
      %27 = vsyncadd [#allocation6], %s26
      %s28 = sshll.u32 [#allocation5], 4
      %s29 = int_to_ptr.vmem [resolvable:$true] %s28
      %34 = dma.hbm_to_vmem [thread:$0]  %s1, 512, %s29, [#allocation6], 128, 128, 8
    $region9: #{_fused_forward.1} parent=1 // pred_fallthru
      _
    // Predicated region
    $region10: #{_fused_forward.1} parent=1 // pred_check
      _
    $region11: #{_fused_forward.1} parent=1 // pred_check_branch
      %36 = sbr.rel (0) target = $region13
    $region12: #{_fused_forward.1} parent=1 // pred_region
      _
    $region13: #{_fused_forward.1} parent=1 // pred_fallthru
      _
    // Predicated region
    $region14: #{_fused_forward.1} parent=1 // pred_check
      _
    $region15: #{_fused_forward.1} parent=1 // pred_check_branch
      %38 = sbr.rel (0) target = $region17
    $region16: #{_fused_forward.1} parent=1 // pred_region
      %s40 = ssub.s32 2048, 2048
      %41 = vsyncadd [#allocation6], %s40
      %s42 = sshll.u32 [#allocation7], 4
      %s43 = int_to_ptr.vmem [resolvable:$true] %s42
      %48 = dma.hbm_to_vmem [thread:$0]  %s3, 2048, %s43, [#allocation6], 128, 128, 8
    $region17: #{_fused_forward.1} parent=1 // pred_fallthru
      _
    // Predicated region
    $region18: #{_fused_forward.1} parent=1 // pred_check
      _
    $region19: #{_fused_forward.1} parent=1 // pred_check_branch
      %50 = sbr.rel (0) target = $region21
    $region20: #{_fused_forward.1} parent=1 // pred_region
      _
    $region21: #{_fused_forward.1} parent=1 // pred_fallthru
      _
    // Predicated region
    $region22: #{_fused_forward.1} parent=1 // pred_check
      _
    $region23: #{_fused_forward.1} parent=1 // pred_check_branch
      %52 = sbr.rel (0) target = $region25
    $region24: #{_fused_forward.1} parent=1 // pred_region
      %53 = dma.done [#allocation3], 128
    $region25: #{_fused_forward.1} parent=1 // pred_fallthru
      _
    // Predicated region
    $region26: #{_fused_forward.1} parent=1 // pred_check
      _
    $region27: #{_fused_forward.1} parent=1 // pred_check_branch
      %55 = sbr.rel (0) target = $region29
    $region28: #{_fused_forward.1} parent=1 // pred_region
      %56 = dma.done [#allocation6], 512
    $region29: #{_fused_forward.1} parent=1 // pred_fallthru
      _
    // Predicated region
    $region30: #{_fused_forward.1} parent=1 // pred_check
      _
    $region31: #{_fused_forward.1} parent=1 // pred_check_branch
      %58 = sbr.rel (0) target = $region33
    $region32: #{_fused_forward.1} parent=1 // pred_region
      %59 = dma.done [#allocation6], 2048
    $region33: #{_fused_forward.1} parent=1 // pred_fallthru
      _
    %v60 = vld [vmem:[#allocation2] sm:$0xff]
    %v61 = vld [vmem:[#allocation5] sm:$0xff]
    %v62 = vld [vmem:[#allocation5 + $0x8] sm:$0xff]
    %v63 = vld [vmem:[#allocation5 + $0x10] sm:$0xff]
    %v64 = vld [vmem:[#allocation5 + $0x18] sm:$0xff]
    %v65 = vld [vmem:[%s2] sm:$0x1]
    %v67 = vlaneseq
    %v68 = vshrl.u32 %v67, 7
    %v69 = vsub.s32 0, %v68
    %v70 = vrot.slane %v65, %v69
    %vm72 = vcmask 261120
    %v74 = vsel %vm72, %v60, 0
    %76 = vmatprep.subr.mxu0 0.0
    %77 = vmatpush1.msra.mxu0 %v61
    %78 = vmatprep.subr.mxu0 0.0
    %79 = vmatpush1.msra.mxu0 %v62
    %80 = vmatprep.subr.mxu0 0.0
    %81 = vmatpush1.msra.mxu0 %v63
    %82 = vmatprep.subr.mxu0 0.0
    %83 = vmatpush1.msra.mxu0 %v64
    %84 = vmatprep.subr.mxu0 0.0
    %85 = vmatpush1.msra.mxu0 0.0
    %86 = vmatprep.subr.mxu0 0.0
    %87 = vmatpush1.msra.mxu0 0.0
    %88 = vmatprep.subr.mxu0 0.0
    %89 = vmatpush1.msra.mxu0 0.0
    %90 = vmatprep.subr.mxu0 0.0
    %91 = vmatpush1.msra.mxu0 0.0
    %92 = vmatprep.subr.mxu0 0.0
    %93 = vmatpush1.msra.mxu0 0.0
    %94 = vmatprep.subr.mxu0 0.0
    %95 = vmatpush1.msra.mxu0 0.0
    %96 = vmatprep.subr.mxu0 0.0
    %97 = vmatpush1.msra.mxu0 0.0
    %98 = vmatprep.subr.mxu0 0.0
    %99 = vmatpush1.msra.mxu0 0.0
    %100 = vmatprep.subr.mxu0 0.0
    %101 = vmatpush1.msra.mxu0 0.0
    %102 = vmatprep.subr.mxu0 0.0
    %103 = vmatpush1.msra.mxu0 0.0
    %104 = vmatprep.subr.mxu0 0.0
    %105 = vmatpush1.msra.mxu0 0.0
    %106 = vmatprep.subr.mxu0 0.0
    %107 = vmatpush1.msra.mxu0 0.0
    %108 = vmatprep.subr.mxu0 0.0
    %109 = vmatpush1.msra.mxu0 0.0
    %110 = vmatprep.subr.mxu0 0.0
    %111 = vmatpush1.msra.mxu0 0.0
    %112 = vmatprep.subr.mxu0 0.0
    %113 = vmatpush1.msra.mxu0 0.0
    %114 = vmatprep.subr.mxu0 0.0
    %115 = vmatpush1.msra.mxu0 0.0
    %116 = vmatprep.subr.mxu0 0.0
    %117 = vmatpush1.msra.mxu0 0.0
    %118 = vmatprep.subr.mxu0 0.0
    %119 = vmatpush1.msra.mxu0 0.0
    %120 = vmatprep.subr.mxu0 0.0
    %121 = vmatpush1.msra.mxu0 0.0
    %122 = vmatprep.subr.mxu0 0.0
    %123 = vmatpush1.msra.mxu0 0.0
    %124 = vmatprep.subr.mxu0 0.0
    %125 = vmatpush1.msra.mxu0 0.0
    %126 = vmatprep.subr.mxu0 0.0
    %127 = vmatpush1.msra.mxu0 0.0
    %128 = vmatprep.subr.mxu0 0.0
    %129 = vmatpush1.msra.mxu0 0.0
    %130 = vmatprep.subr.mxu0 0.0
    %131 = vmatpush1.msra.mxu0 0.0
    %132 = vmatprep.subr.mxu0 0.0
    %133 = vmatpush1.msra.mxu0 0.0
    %134 = vmatprep.subr.mxu0 0.0
    %135 = vmatpush1.msra.mxu0 0.0
    %136 = vmatprep.subr.mxu0 0.0
    %137 = vmatpush1.msra.mxu0 0.0
    %138 = vmatprep.subr.mxu0 0.0
    %139 = vmatpush1.msra.mxu0 0.0
    %140 = vmatprep.mubr.f32.mxu0 0.0
    %141 = vmatmul.mubr.f32.gmra.mrb[0].mxu0 %v74
    %v142 = vpop.f32.mrb[0].mxu0
    %v143 = vadd.f32 %v70, %v142
    %v144 = vpop.f32.mrb[0].mxu0
    %145 = vdwg.mxu0
    %v146 = vmax.f32 %v143, 0.0
    %v147 = vld [vmem:[#allocation7] sm:$0xff]
    %v148 = vld [vmem:[#allocation7 + $0x8] sm:$0xff]
    %v149 = vld [vmem:[#allocation7 + $0x10] sm:$0xff]
    %v150 = vld [vmem:[#allocation7 + $0x18] sm:$0xff]
    %v151 = vld [vmem:[#allocation7 + $0x20] sm:$0xff]
    %v152 = vld [vmem:[#allocation7 + $0x28] sm:$0xff]
    %v153 = vld [vmem:[#allocation7 + $0x30] sm:$0xff]
    %v154 = vld [vmem:[#allocation7 + $0x38] sm:$0xff]
    %v155 = vld [vmem:[#allocation7 + $0x40] sm:$0xff]
    %v156 = vld [vmem:[#allocation7 + $0x48] sm:$0xff]
    %v157 = vld [vmem:[#allocation7 + $0x50] sm:$0xff]
    %v158 = vld [vmem:[#allocation7 + $0x58] sm:$0xff]
    %v159 = vld [vmem:[#allocation7 + $0x60] sm:$0xff]
    %v160 = vld [vmem:[#allocation7 + $0x68] sm:$0xff]
    %v161 = vld [vmem:[#allocation7 + $0x70] sm:$0xff]
    %v162 = vld [vmem:[#allocation7 + $0x78] sm:$0xff]
    %v163 = vld [vmem:[%s4] sm:$0x1]
    %v165 = vlaneseq
    %v166 = vshrl.u32 %v165, 7
    %v167 = vsub.s32 0, %v166
    %v168 = vrot.slane %v163, %v167
    %170 = vmatprep.subr.mxu0 0.0
    %171 = vmatpush1.msra.mxu0 %v147
    %172 = vmatprep.subr.mxu0 0.0
    %173 = vmatpush1.msra.mxu0 %v148
    %174 = vmatprep.subr.mxu0 0.0
    %175 = vmatpush1.msra.mxu0 %v149
    %176 = vmatprep.subr.mxu0 0.0
    %177 = vmatpush1.msra.mxu0 %v150
    %178 = vmatprep.subr.mxu0 0.0
    %179 = vmatpush1.msra.mxu0 %v151
    %180 = vmatprep.subr.mxu0 0.0
    %181 = vmatpush1.msra.mxu0 %v152
    %182 = vmatprep.subr.mxu0 0.0
    %183 = vmatpush1.msra.mxu0 %v153
    %184 = vmatprep.subr.mxu0 0.0
    %185 = vmatpush1.msra.mxu0 %v154
    %186 = vmatprep.subr.mxu0 0.0
    %187 = vmatpush1.msra.mxu0 %v155
    %188 = vmatprep.subr.mxu0 0.0
    %189 = vmatpush1.msra.mxu0 %v156
    %190 = vmatprep.subr.mxu0 0.0
    %191 = vmatpush1.msra.mxu0 %v157
    %192 = vmatprep.subr.mxu0 0.0
    %193 = vmatpush1.msra.mxu0 %v158
    %194 = vmatprep.subr.mxu0 0.0
    %195 = vmatpush1.msra.mxu0 %v159
    %196 = vmatprep.subr.mxu0 0.0
    %197 = vmatpush1.msra.mxu0 %v160
    %198 = vmatprep.subr.mxu0 0.0
    %199 = vmatpush1.msra.mxu0 %v161
    %200 = vmatprep.subr.mxu0 0.0
    %201 = vmatpush1.msra.mxu0 %v162
    %202 = vmatprep.subr.mxu0 0.0
    %203 = vmatpush1.msra.mxu0 0.0
    %204 = vmatprep.subr.mxu0 0.0
    %205 = vmatpush1.msra.mxu0 0.0
    %206 = vmatprep.subr.mxu0 0.0
    %207 = vmatpush1.msra.mxu0 0.0
    %208 = vmatprep.subr.mxu0 0.0
    %209 = vmatpush1.msra.mxu0 0.0
    %210 = vmatprep.subr.mxu0 0.0
    %211 = vmatpush1.msra.mxu0 0.0
    %212 = vmatprep.subr.mxu0 0.0
    %213 = vmatpush1.msra.mxu0 0.0
    %214 = vmatprep.subr.mxu0 0.0
    %215 = vmatpush1.msra.mxu0 0.0
    %216 = vmatprep.subr.mxu0 0.0
    %217 = vmatpush1.msra.mxu0 0.0
    %218 = vmatprep.subr.mxu0 0.0
    %219 = vmatpush1.msra.mxu0 0.0
    %220 = vmatprep.subr.mxu0 0.0
    %221 = vmatpush1.msra.mxu0 0.0
    %222 = vmatprep.subr.mxu0 0.0
    %223 = vmatpush1.msra.mxu0 0.0
    %224 = vmatprep.subr.mxu0 0.0
    %225 = vmatpush1.msra.mxu0 0.0
    %226 = vmatprep.subr.mxu0 0.0
    %227 = vmatpush1.msra.mxu0 0.0
    %228 = vmatprep.subr.mxu0 0.0
    %229 = vmatpush1.msra.mxu0 0.0
    %230 = vmatprep.subr.mxu0 0.0
    %231 = vmatpush1.msra.mxu0 0.0
    %232 = vmatprep.subr.mxu0 0.0
    %233 = vmatpush1.msra.mxu0 0.0
    %234 = vmatprep.mubr.f32.mxu0 0.0
    %235 = vmatmul.mubr.f32.gmra.mrb[0].mxu0 %v146
    %v236 = vpop.f32.mrb[0].mxu0
    %v237 = vadd.f32 %v168, %v236
    %v238 = vpop.f32.mrb[0].mxu0
    %239 = vdwg.mxu0
    %240 = vst [vmem:[#allocation8] sm:$0xff] %v237
    // Predicated region
    $region34: #{_fused_forward.1} parent=1 // pred_check
      _
    $region35: #{_fused_forward.1} parent=1 // pred_check_branch
      %242 = sbr.rel (0) target = $region37
    $region36: #{_fused_forward.1} parent=1 // pred_region
      %s244 = ssub.s32 128, 128
      %245 = vsyncadd [#allocation4], %s244
      %s247 = sshll.u32 [#allocation8], 4
      %s248 = int_to_ptr.vmem [resolvable:$true] %s247
      %250 = dma.vmem_to_hbm [thread:$0]  %s248, 128, %s5, [#allocation4]
    $region37: #{_fused_forward.1} parent=1 // pred_fallthru
      _
    // Predicated region
    $region38: #{_fused_forward.1} parent=1 // pred_check
      _
    $region39: #{_fused_forward.1} parent=1 // pred_check_branch
      %252 = sbr.rel (0) target = $region41
    $region40: #{_fused_forward.1} parent=1 // pred_region
      %253 = dma.done [#allocation4], 128
    $region41: #{_fused_forward.1} parent=1 // pred_fallthru
      _
    %254 = vsyncpa [#allocation3], 1
    %255 = vsyncpa [#allocation6], 1
    %256 = vsyncpa [#allocation4], 1

</llo_original>
